<compile_context>
chip_gen: v5e
topology: v5e:2x2
jax: 0.10.0
libtpu: 0.0.40
codegen_flags: <defaults>
</compile_context>

<pallas_src>
import jax
import jax.numpy as jnp
from jax.experimental import pallas as pl
from jax.experimental.pallas import tpu as pltpu


N_OUT = 30     # real number of classes
N_PAD = 128    # lane-dense padded output width
K_DIM = 512 + 768   # concatenated feature width
_TILE_B = 128  # batch tile for the gridded (serving-batch) path


# ----------------------------- Pallas kernel ---------------------------------
def mlp_fusion_kernel(
    feat_ref,  # [tile_b, 1280] bf16  concatenated (img | text) features
    w_ref,     # [1280, 128]    bf16  folded + lane-padded weight
    c_ref,     # [1, 128]       f32   folded + lane-padded bias
    out_ref,   # [tile_b, 128]  f32   padded logits
):
    # out = feat @ W + c   (bf16 MXU operands, f32 accumulation, lane-dense store)
    out_ref[...] = (
        jnp.dot(feat_ref[...], w_ref[...], preferred_element_type=jnp.float32)
        + c_ref[...]
    ).astype(out_ref.dtype)


def mlp_fusion_head(img_feat, txt_feat, folded_params):
    """Runs the folded fusion head; returns [B, 30] f32 logits."""
    w, c = folded_params                                   # [1280,128] bf16, [1,128] f32
    # Concat + bf16 cast in the wrapper: fuses into the producer, halves activation DMA.
    feat = jnp.concatenate([img_feat, txt_feat], axis=1).astype(jnp.bfloat16)
    batch = feat.shape[0]
    k_dim, n_pad = w.shape

    cost = pl.CostEstimate(
        flops=int(2 * batch * k_dim * n_pad),
        transcendentals=0,
        bytes_accessed=int(
            feat.size * feat.dtype.itemsize
            + w.size * w.dtype.itemsize
            + c.size * c.dtype.itemsize
            + batch * n_pad * 4
        ),
    )

    if batch >= 2 * _TILE_B and batch % _TILE_B == 0:
        # Serving-batch path: parallel batch grid axis (shards across both TCs on v7x;
        # harmless serial loop on v5e/v6e). Weights/bias stay VMEM-resident across steps.
        out_padded = pl.pallas_call(
            mlp_fusion_kernel,
            out_shape=jax.ShapeDtypeStruct((batch, n_pad), jnp.float32),
            grid_spec=pltpu.PrefetchScalarGridSpec(
                num_scalar_prefetch=0,
                grid=(batch // _TILE_B,),
                in_specs=[
                    pl.BlockSpec((_TILE_B, k_dim), lambda i: (i, 0)),
                    pl.BlockSpec((k_dim, n_pad), lambda i: (0, 0)),
                    pl.BlockSpec((1, n_pad), lambda i: (0, 0)),
                ],
                out_specs=pl.BlockSpec((_TILE_B, n_pad), lambda i: (i, 0)),
            ),
            compiler_params=pltpu.CompilerParams(
                dimension_semantics=("parallel",),
                vmem_limit_bytes=8 * 1024 * 1024,   # modest; tiles are tiny on all gens
            ),
            cost_estimate=cost,
        )(feat, w, c)
    else:
        # Tiny-batch path: whole problem in one VMEM-resident block, no grid.
        vmem = pl.BlockSpec(memory_space=pltpu.VMEM)
        out_padded = pl.pallas_call(
            mlp_fusion_kernel,
            out_shape=jax.ShapeDtypeStruct((batch, n_pad), jnp.float32),
            in_specs=[vmem] * 3,
            out_specs=vmem,
            compiler_params=pltpu.CompilerParams(vmem_limit_bytes=8 * 1024 * 1024),
            cost_estimate=cost,
        )(feat, w, c)

    # Padded columns are exactly zero-weighted; slice them off before any loss/softmax.
    return out_padded[:, :N_OUT]


# ------------------------- deterministic parameters ---------------------------
def make_params(key):
    ks = jax.random.split(key, 6)
    # torch nn.Linear stores W as [out, in].
    w_text = jax.random.normal(ks[0], (512, 768), jnp.float32) * 0.02
    b_text = jax.random.normal(ks[1], (512,), jnp.float32) * 0.02
    w_fuse = jax.random.normal(ks[2], (512, 1024), jnp.float32) * 0.02
    b_fuse = jax.random.normal(ks[3], (512,), jnp.float32) * 0.02
    w_out = jax.random.normal(ks[4], (30, 512), jnp.float32) * 0.02
    b_out = jax.random.normal(ks[5], (30,), jnp.float32) * 0.02
    torch_params = (w_text, b_text, w_fuse, b_fuse, w_out, b_out)

    # Offline fold of the purely affine head (exact: no activation in the original module).
    hi = jax.lax.Precision.HIGHEST
    wf_img = w_fuse[:, :512]   # fusion columns acting on the image half of concat
    wf_txt = w_fuse[:, 512:]   # fusion columns acting on the text  half of concat
    a_mat = jnp.dot(wf_img.T, w_out.T, precision=hi)                                   # [512, 30]
    b_mat = jnp.dot(jnp.dot(w_text.T, wf_txt.T, precision=hi), w_out.T, precision=hi)  # [768, 30]
    c_vec = jnp.dot(jnp.dot(b_text, wf_txt.T, precision=hi) + b_fuse, w_out.T, precision=hi) + b_out

    # Merge into one weight and pad to a lane-dense N=128 (padded columns exactly zero).
    w_folded = jnp.concatenate([a_mat, b_mat], axis=0)                  # [1280, 30]
    w_folded = jnp.pad(w_folded, ((0, 0), (0, N_PAD - N_OUT)))          # [1280, 128]
    c_folded = jnp.pad(c_vec.reshape(1, -1), ((0, 0), (0, N_PAD - N_OUT)))  # [1, 128]

    folded = (w_folded.astype(jnp.bfloat16), c_folded.astype(jnp.float32))
    return folded, torch_params


# ------------------- stand-in frozen encoders (plain JAX glue) ----------------
# TODO(synk): pretrained torchvision resnet18 + huggingface bert-base-uncased have no clean
# Pallas equivalent without their checkpoints; deterministic stand-ins produce the same
# feature shapes (512-d image feature, 768-d text feature).
def image_encoder_stub(img, w):          # img: [B, 3, H, W] (NCHW) -> [B, 512]
    pooled = jnp.mean(img, axis=(2, 3))  # [B, 3]
    return pooled @ w                    # [B, 512]


def text_encoder_stub(input_ids, attention_mask, emb):  # -> [B, 768]
    tok = emb[input_ids]                                 # [B, S, 768]
    m = attention_mask.astype(jnp.float32)[..., None]    # [B, S, 1]
    return (tok * m).sum(axis=1) / jnp.maximum(m.sum(axis=1), 1.0)


# ------------------------------ reference (JAX) --------------------------------
def reference_head(img_feat, txt_feat, torch_params):
    w_text, b_text, w_fuse, b_fuse, w_out, b_out = torch_params
    hi = jax.lax.Precision.HIGHEST
    text = jnp.dot(txt_feat, w_text.T, precision=hi) + b_text
    combined = jnp.concatenate([img_feat, text], axis=1)
    combined = jnp.dot(combined, w_fuse.T, precision=hi) + b_fuse
    return jnp.dot(combined, w_out.T, precision=hi) + b_out


if __name__ == "__main__":
    key = jax.random.PRNGKey(0)
    k_p, k_img, k_ids, k_wi, k_emb = jax.random.split(key, 5)

    folded, torch_params = make_params(k_p)

    # ---- small-batch case (single VMEM block path), full stand-in pipeline ----
    B, S, VOCAB = 2, 8, 1000
    img = jax.random.normal(k_img, (B, 3, 32, 32), jnp.float32)          # NCHW
    input_ids = jax.random.randint(k_ids, (B, S), 0, VOCAB)
    attention_mask = jnp.ones((B, S), jnp.int32)

    # Stand-in frozen encoder parameters (deterministic).
    w_img_stub = jax.random.normal(k_wi, (3, 512), jnp.float32) * 0.1
    emb_stub = jax.random.normal(k_emb, (VOCAB, 768), jnp.float32) * 0.02

    img_feat = image_encoder_stub(img, w_img_stub)                        # [B, 512]
    txt_feat = text_encoder_stub(input_ids, attention_mask, emb_stub)     # [B, 768]

    out = jax.block_until_ready(mlp_fusion_head(img_feat, txt_feat, folded))
    ref = reference_head(img_feat, txt_feat, torch_params)
    assert out.shape == (B, N_OUT), out.shape
    # bf16 folded weights + bf16 activations: expected |err| ~1e-5 on outputs of ~2e-2.
    assert jnp.allclose(out, ref, atol=1e-3, rtol=1e-3), float(jnp.max(jnp.abs(out - ref)))

    # ---- serving-batch case (parallel batch grid path, v7x megacore) ----
    B2 = 256
    k1, k2 = jax.random.split(jax.random.PRNGKey(1))
    img_feat2 = jax.random.normal(k1, (B2, 512), jnp.float32) * 0.1
    txt_feat2 = jax.random.normal(k2, (B2, 768), jnp.float32) * 0.1
    out2 = jax.block_until_ready(mlp_fusion_head(img_feat2, txt_feat2, folded))
    ref2 = reference_head(img_feat2, txt_feat2, torch_params)
    assert out2.shape == (B2, N_OUT), out2.shape
    assert jnp.allclose(out2, ref2, atol=2e-3, rtol=2e-3), float(jnp.max(jnp.abs(out2 - ref2)))

    print("KERNEL_OK")
</pallas_src>

<mosaic_0001>
module attributes {stable_mosaic.version = 11 : i64} {
  func.func @mlp_fusion_kernel(%arg0: memref<2x1280xbf16, #tpu.memory_space<vmem>>, %arg1: memref<1280x128xbf16, #tpu.memory_space<vmem>>, %arg2: memref<1x128xf32, #tpu.memory_space<vmem>>, %arg3: memref<2x128xf32, #tpu.memory_space<vmem>>) attributes {dimension_semantics = [], scalar_prefetch = 0 : i64, scratch_operands = 0 : i64, tpu.core_type = #tpu.core_type<tc>} {
    %c0 = arith.constant 0 : index
    %c0_0 = arith.constant 0 : index
    %0 = vector.load %arg0[%c0, %c0_0] : memref<2x1280xbf16, #tpu.memory_space<vmem>>, vector<2x1280xbf16>
    %c0_1 = arith.constant 0 : index
    %c0_2 = arith.constant 0 : index
    %1 = vector.load %arg1[%c0_1, %c0_2] : memref<1280x128xbf16, #tpu.memory_space<vmem>>, vector<1280x128xbf16>
    %cst = arith.constant dense<0.000000e+00> : vector<2x128xf32>
    %2 = tpu.matmul %0, %1, %cst {dimension_numbers = #tpu.dot_dimension_numbers<[1], [0], [0], [1], [0, 0, 1, 1], [], []>} : vector<2x1280xbf16>, vector<1280x128xbf16>, vector<2x128xf32> -> vector<2x128xf32>
    %c0_3 = arith.constant 0 : index
    %c0_4 = arith.constant 0 : index
    %3 = vector.load %arg2[%c0_3, %c0_4] : memref<1x128xf32, #tpu.memory_space<vmem>>, vector<1x128xf32>
    %4 = vector.broadcast %3 : vector<1x128xf32> to vector<2x128xf32>
    %5 = arith.addf %2, %4 : vector<2x128xf32>
    %c0_5 = arith.constant 0 : index
    %c0_6 = arith.constant 0 : index
    %6 = vector.load %arg3[%c0_5, %c0_6] : memref<2x128xf32, #tpu.memory_space<vmem>>, vector<2x128xf32>
    tpu.vector_store %arg3[%c0_5, %c0_6], %5 {strides = array<i32>} : memref<2x128xf32, #tpu.memory_space<vmem>>, vector<2x128xf32>,
    return
  }
}

</mosaic_0001>

<llo_original>
// kernel: tpu_custom_call.1
$region0: #{tpu_custom_call.1}
  #allocation0 [shape = 'u32[]', space=smem, size = 0x4, offset = 0x4, fixed_abs, tag = 'smem constant byte address 0x4 - core index']
  #allocation1 [shape = 'u32[72,128]{1,0:T(1,128)}', space=vmem, size = 0x9000, scoped, tag = 'internal scratch']
  %s0 = inlined_call_operand.hbm [shape: bf16[2,1280], index: 0, kind: input, shape index: {}]
  %s1 = inlined_call_operand.hbm [shape: bf16[1280,128], index: 1, kind: input, shape index: {}]
  %s2 = inlined_call_operand.vmem [shape: f32[1,128], index: 2, kind: input, shape index: {}]
  %s3 = inlined_call_operand.hbm [shape: f32[2,128], index: 3, kind: output, shape index: {}]
  %s4 = sld [smem:[#allocation0]]
  $region30: #{tpu_custom_call.1} parent=0
    _
  %s6 = ssub.s32 1, %s4
  %s7 = scalar_select 0, %s6, %s4
  $region1: #{tpu_custom_call.1} parent=0
    #allocation2 [shape = 'u8[5120]{0}', space=vmem, size = 0x1400, scoped, tag = 'input window, operand 0, single buffered']
    #allocation3 [shape = 's32[1]{0}', space=sflag, size = 0x4, scoped, tag = 'scoped memory for tpu_custom_call.1']
    #allocation4 [shape = 's32[1]{0}', space=sflag, size = 0x4, scoped, tag = 'scoped memory for tpu_custom_call.1']
    #allocation5 [shape = 'u8[327680]{0}', space=vmem, size = 0x50000, scoped, tag = 'input window, operand 1, single buffered']
    #allocation6 [shape = 's32[1]{0}', space=sflag, size = 0x4, scoped, tag = 'scoped memory for tpu_custom_call.1']
    #allocation7 [shape = 'u8[1024]{0}', space=vmem, size = 0x400, scoped, tag = 'output window, operand 0, single buffered']
    %8 = vsyncpa [#allocation3], 0
    %9 = vsyncpa [#allocation6], 0
    %10 = vsyncpa [#allocation4], 0
    // Predicated region
    $region2: #{tpu_custom_call.1} parent=1 // pred_check
      _
    $region3: #{tpu_custom_call.1} parent=1 // pred_check_branch
      %12 = sbr.rel (0) target = $region5
    $region4: #{tpu_custom_call.1} parent=1 // pred_region
      %14 = vsyncadd [#allocation3], 0
      %s16 = sshll.u32 %s0, 4
      %s17 = int_to_ptr.hbm [resolvable:$true] %s16
      %s18 = sshll.u32 [#allocation2], 4
      %s19 = int_to_ptr.vmem [resolvable:$true] %s18
      %21 = dma.hbm_to_vmem [thread:$0]  %s17, 160, %s19, [#allocation3]
    $region5: #{tpu_custom_call.1} parent=1 // pred_fallthru
      _
    // Predicated region
    $region6: #{tpu_custom_call.1} parent=1 // pred_check
      _
    $region7: #{tpu_custom_call.1} parent=1 // pred_check_branch
      %23 = sbr.rel (0) target = $region9
    $region8: #{tpu_custom_call.1} parent=1 // pred_region
      %25 = vsyncadd [#allocation6], 0
      %s26 = sshll.u32 %s1, 4
      %s27 = int_to_ptr.hbm [resolvable:$true] %s26
      %s28 = sshll.u32 [#allocation5], 4
      %s29 = int_to_ptr.vmem [resolvable:$true] %s28
      %34 = dma.hbm_to_vmem [thread:$0]  %s27, 10240, %s29, [#allocation6], 64, 64, 4
    $region9: #{tpu_custom_call.1} parent=1 // pred_fallthru
      _
    // Predicated region
    $region10: #{tpu_custom_call.1} parent=1 // pred_check
      _
    $region11: #{tpu_custom_call.1} parent=1 // pred_check_branch
      %36 = sbr.rel (0) target = $region13
    $region12: #{tpu_custom_call.1} parent=1 // pred_region
      _
    $region13: #{tpu_custom_call.1} parent=1 // pred_fallthru
      _
    // Predicated region
    $region14: #{tpu_custom_call.1} parent=1 // pred_check
      _
    $region15: #{tpu_custom_call.1} parent=1 // pred_check_branch
      %38 = sbr.rel (0) target = $region17
    $region16: #{tpu_custom_call.1} parent=1 // pred_region
      %40 = dma.done [#allocation3], 160
    $region17: #{tpu_custom_call.1} parent=1 // pred_fallthru
      _
    // Predicated region
    $region18: #{tpu_custom_call.1} parent=1 // pred_check
      _
    $region19: #{tpu_custom_call.1} parent=1 // pred_check_branch
      %42 = sbr.rel (0) target = $region21
    $region20: #{tpu_custom_call.1} parent=1 // pred_region
      %44 = dma.done [#allocation6], 10240
    $region21: #{tpu_custom_call.1} parent=1 // pred_fallthru
      _
    %v45 = vld [vmem:[#allocation2] sm:$0xff]
    %v46 = vld [vmem:[#allocation2 + $0x8] sm:$0x3]
    %v47 = vld [vmem:[#allocation5] sm:$0xf]
    %v48 = vld [vmem:[#allocation5 + $0x4] sm:$0xf]
    %v49 = vld [vmem:[#allocation5 + $0x8] sm:$0xf]
    %v50 = vld [vmem:[#allocation5 + $0xc] sm:$0xf]
    %v51 = vld [vmem:[#allocation5 + $0x10] sm:$0xf]
    %v52 = vld [vmem:[#allocation5 + $0x14] sm:$0xf]
    %v53 = vld [vmem:[#allocation5 + $0x18] sm:$0xf]
    %v54 = vld [vmem:[#allocation5 + $0x1c] sm:$0xf]
    %v55 = vld [vmem:[#allocation5 + $0x20] sm:$0xf]
    %v56 = vld [vmem:[#allocation5 + $0x24] sm:$0xf]
    %v57 = vld [vmem:[#allocation5 + $0x28] sm:$0xf]
    %v58 = vld [vmem:[#allocation5 + $0x2c] sm:$0xf]
    %v59 = vld [vmem:[#allocation5 + $0x30] sm:$0xf]
    %v60 = vld [vmem:[#allocation5 + $0x34] sm:$0xf]
    %v61 = vld [vmem:[#allocation5 + $0x38] sm:$0xf]
    %v62 = vld [vmem:[#allocation5 + $0x3c] sm:$0xf]
    %v63 = vld [vmem:[#allocation5 + $0x40] sm:$0xf]
    %v64 = vld [vmem:[#allocation5 + $0x44] sm:$0xf]
    %v65 = vld [vmem:[#allocation5 + $0x48] sm:$0xf]
    %v66 = vld [vmem:[#allocation5 + $0x4c] sm:$0xf]
    %v67 = vld [vmem:[#allocation5 + $0x50] sm:$0xf]
    %v68 = vld [vmem:[#allocation5 + $0x54] sm:$0xf]
    %v69 = vld [vmem:[#allocation5 + $0x58] sm:$0xf]
    %v70 = vld [vmem:[#allocation5 + $0x5c] sm:$0xf]
    %v71 = vld [vmem:[#allocation5 + $0x60] sm:$0xf]
    %v72 = vld [vmem:[#allocation5 + $0x64] sm:$0xf]
    %v73 = vld [vmem:[#allocation5 + $0x68] sm:$0xf]
    %v74 = vld [vmem:[#allocation5 + $0x6c] sm:$0xf]
    %v75 = vld [vmem:[#allocation5 + $0x70] sm:$0xf]
    %v76 = vld [vmem:[#allocation5 + $0x74] sm:$0xf]
    %v77 = vld [vmem:[#allocation5 + $0x78] sm:$0xf]
    %v78 = vld [vmem:[#allocation5 + $0x7c] sm:$0xf]
    %v79 = vld [vmem:[#allocation5 + $0x80] sm:$0xf]
    %v80 = vld [vmem:[#allocation5 + $0x84] sm:$0xf]
    %v81 = vld [vmem:[#allocation5 + $0x88] sm:$0xf]
    %v82 = vld [vmem:[#allocation5 + $0x8c] sm:$0xf]
    %v83 = vld [vmem:[#allocation5 + $0x90] sm:$0xf]
    %v84 = vld [vmem:[#allocation5 + $0x94] sm:$0xf]
    %v85 = vld [vmem:[#allocation5 + $0x98] sm:$0xf]
    %v86 = vld [vmem:[#allocation5 + $0x9c] sm:$0xf]
    %v87 = vld [vmem:[#allocation5 + $0xa0] sm:$0xf]
    %v88 = vld [vmem:[#allocation5 + $0xa4] sm:$0xf]
    %v89 = vld [vmem:[#allocation5 + $0xa8] sm:$0xf]
    %v90 = vld [vmem:[#allocation5 + $0xac] sm:$0xf]
    %v91 = vld [vmem:[#allocation5 + $0xb0] sm:$0xf]
    %v92 = vld [vmem:[#allocation5 + $0xb4] sm:$0xf]
    %v93 = vld [vmem:[#allocation5 + $0xb8] sm:$0xf]
    %v94 = vld [vmem:[#allocation5 + $0xbc] sm:$0xf]
    %v95 = vld [vmem:[#allocation5 + $0xc0] sm:$0xf]
    %v96 = vld [vmem:[#allocation5 + $0xc4] sm:$0xf]
    %v97 = vld [vmem:[#allocation5 + $0xc8] sm:$0xf]
    %v98 = vld [vmem:[#allocation5 + $0xcc] sm:$0xf]
    %v99 = vld [vmem:[#allocation5 + $0xd0] sm:$0xf]
    %v100 = vld [vmem:[#allocation5 + $0xd4] sm:$0xf]
    %v101 = vld [vmem:[#allocation5 + $0xd8] sm:$0xf]
    %v102 = vld [vmem:[#allocation5 + $0xdc] sm:$0xf]
    %v103 = vld [vmem:[#allocation5 + $0xe0] sm:$0xf]
    %v104 = vld [vmem:[#allocation5 + $0xe4] sm:$0xf]
    %v105 = vld [vmem:[#allocation5 + $0xe8] sm:$0xf]
    %v106 = vld [vmem:[#allocation5 + $0xec] sm:$0xf]
    %v107 = vld [vmem:[#allocation5 + $0xf0] sm:$0xf]
    %v108 = vld [vmem:[#allocation5 + $0xf4] sm:$0xf]
    %v109 = vld [vmem:[#allocation5 + $0xf8] sm:$0xf]
    %v110 = vld [vmem:[#allocation5 + $0xfc] sm:$0xf]
    %v111 = vld [vmem:[#allocation5 + $0x100] sm:$0xf]
    %v112 = vld [vmem:[#allocation5 + $0x104] sm:$0xf]
    %v113 = vld [vmem:[#allocation5 + $0x108] sm:$0xf]
    %v114 = vld [vmem:[#allocation5 + $0x10c] sm:$0xf]
    %v115 = vld [vmem:[#allocation5 + $0x110] sm:$0xf]
    %v116 = vld [vmem:[#allocation5 + $0x114] sm:$0xf]
    %v117 = vld [vmem:[#allocation5 + $0x118] sm:$0xf]
    %v118 = vld [vmem:[#allocation5 + $0x11c] sm:$0xf]
    %v119 = vld [vmem:[#allocation5 + $0x120] sm:$0xf]
    %v120 = vld [vmem:[#allocation5 + $0x124] sm:$0xf]
    %v121 = vld [vmem:[#allocation5 + $0x128] sm:$0xf]
    %v122 = vld [vmem:[#allocation5 + $0x12c] sm:$0xf]
    %v123 = vld [vmem:[#allocation5 + $0x130] sm:$0xf]
    %v124 = vld [vmem:[#allocation5 + $0x134] sm:$0xf]
    %v125 = vld [vmem:[#allocation5 + $0x138] sm:$0xf]
    %v126 = vld [vmem:[#allocation5 + $0x13c] sm:$0xf]
    %v127 = vld [vmem:[#allocation5 + $0x140] sm:$0xf]
    %v128 = vld [vmem:[#allocation5 + $0x144] sm:$0xf]
    %v129 = vld [vmem:[#allocation5 + $0x148] sm:$0xf]
    %v130 = vld [vmem:[#allocation5 + $0x14c] sm:$0xf]
    %v131 = vld [vmem:[#allocation5 + $0x150] sm:$0xf]
    %v132 = vld [vmem:[#allocation5 + $0x154] sm:$0xf]
    %v133 = vld [vmem:[#allocation5 + $0x158] sm:$0xf]
    %v134 = vld [vmem:[#allocation5 + $0x15c] sm:$0xf]
    %v135 = vld [vmem:[#allocation5 + $0x160] sm:$0xf]
    %v136 = vld [vmem:[#allocation5 + $0x164] sm:$0xf]
    %v137 = vld [vmem:[#allocation5 + $0x168] sm:$0xf]
    %v138 = vld [vmem:[#allocation5 + $0x16c] sm:$0xf]
    %v139 = vld [vmem:[#allocation5 + $0x170] sm:$0xf]
    %v140 = vld [vmem:[#allocation5 + $0x174] sm:$0xf]
    %v141 = vld [vmem:[#allocation5 + $0x178] sm:$0xf]
    %v142 = vld [vmem:[#allocation5 + $0x17c] sm:$0xf]
    %v143 = vld [vmem:[#allocation5 + $0x180] sm:$0xf]
    %v144 = vld [vmem:[#allocation5 + $0x184] sm:$0xf]
    %v145 = vld [vmem:[#allocation5 + $0x188] sm:$0xf]
    %v146 = vld [vmem:[#allocation5 + $0x18c] sm:$0xf]
    %v147 = vld [vmem:[#allocation5 + $0x190] sm:$0xf]
    %v148 = vld [vmem:[#allocation5 + $0x194] sm:$0xf]
    %v149 = vld [vmem:[#allocation5 + $0x198] sm:$0xf]
    %v150 = vld [vmem:[#allocation5 + $0x19c] sm:$0xf]
    %v151 = vld [vmem:[#allocation5 + $0x1a0] sm:$0xf]
    %v152 = vld [vmem:[#allocation5 + $0x1a4] sm:$0xf]
    %v153 = vld [vmem:[#allocation5 + $0x1a8] sm:$0xf]
    %v154 = vld [vmem:[#allocation5 + $0x1ac] sm:$0xf]
    %v155 = vld [vmem:[#allocation5 + $0x1b0] sm:$0xf]
    %v156 = vld [vmem:[#allocation5 + $0x1b4] sm:$0xf]
    %v157 = vld [vmem:[#allocation5 + $0x1b8] sm:$0xf]
    %v158 = vld [vmem:[#allocation5 + $0x1bc] sm:$0xf]
    %v159 = vld [vmem:[#allocation5 + $0x1c0] sm:$0xf]
    %v160 = vld [vmem:[#allocation5 + $0x1c4] sm:$0xf]
    %v161 = vld [vmem:[#allocation5 + $0x1c8] sm:$0xf]
    %v162 = vld [vmem:[#allocation5 + $0x1cc] sm:$0xf]
    %v163 = vld [vmem:[#allocation5 + $0x1d0] sm:$0xf]
    %v164 = vld [vmem:[#allocation5 + $0x1d4] sm:$0xf]
    %v165 = vld [vmem:[#allocation5 + $0x1d8] sm:$0xf]
    %v166 = vld [vmem:[#allocation5 + $0x1dc] sm:$0xf]
    %v167 = vld [vmem:[#allocation5 + $0x1e0] sm:$0xf]
    %v168 = vld [vmem:[#allocation5 + $0x1e4] sm:$0xf]
    %v169 = vld [vmem:[#allocation5 + $0x1e8] sm:$0xf]
    %v170 = vld [vmem:[#allocation5 + $0x1ec] sm:$0xf]
    %v171 = vld [vmem:[#allocation5 + $0x1f0] sm:$0xf]
    %v172 = vld [vmem:[#allocation5 + $0x1f4] sm:$0xf]
    %v173 = vld [vmem:[#allocation5 + $0x1f8] sm:$0xf]
    %v174 = vld [vmem:[#allocation5 + $0x1fc] sm:$0xf]
    %v175 = vld [vmem:[#allocation5 + $0x200] sm:$0xf]
    %v176 = vld [vmem:[#allocation5 + $0x204] sm:$0xf]
    %v177 = vld [vmem:[#allocation5 + $0x208] sm:$0xf]
    %v178 = vld [vmem:[#allocation5 + $0x20c] sm:$0xf]
    %v179 = vld [vmem:[#allocation5 + $0x210] sm:$0xf]
    %v180 = vld [vmem:[#allocation5 + $0x214] sm:$0xf]
    %v181 = vld [vmem:[#allocation5 + $0x218] sm:$0xf]
    %v182 = vld [vmem:[#allocation5 + $0x21c] sm:$0xf]
    %v183 = vld [vmem:[#allocation5 + $0x220] sm:$0xf]
    %v184 = vld [vmem:[#allocation5 + $0x224] sm:$0xf]
    %v185 = vld [vmem:[#allocation5 + $0x228] sm:$0xf]
    %v186 = vld [vmem:[#allocation5 + $0x22c] sm:$0xf]
    %v187 = vld [vmem:[#allocation5 + $0x230] sm:$0xf]
    %v188 = vld [vmem:[#allocation5 + $0x234] sm:$0xf]
    %v189 = vld [vmem:[#allocation5 + $0x238] sm:$0xf]
    %v190 = vld [vmem:[#allocation5 + $0x23c] sm:$0xf]
    %v191 = vld [vmem:[#allocation5 + $0x240] sm:$0xf]
    %v192 = vld [vmem:[#allocation5 + $0x244] sm:$0xf]
    %v193 = vld [vmem:[#allocation5 + $0x248] sm:$0xf]
    %v194 = vld [vmem:[#allocation5 + $0x24c] sm:$0xf]
    %v195 = vld [vmem:[#allocation5 + $0x250] sm:$0xf]
    %v196 = vld [vmem:[#allocation5 + $0x254] sm:$0xf]
    %v197 = vld [vmem:[#allocation5 + $0x258] sm:$0xf]
    %v198 = vld [vmem:[#allocation5 + $0x25c] sm:$0xf]
    %v199 = vld [vmem:[#allocation5 + $0x260] sm:$0xf]
    %v200 = vld [vmem:[#allocation5 + $0x264] sm:$0xf]
    %v201 = vld [vmem:[#allocation5 + $0x268] sm:$0xf]
    %v202 = vld [vmem:[#allocation5 + $0x26c] sm:$0xf]
    %v203 = vld [vmem:[#allocation5 + $0x270] sm:$0xf]
    %v204 = vld [vmem:[#allocation5 + $0x274] sm:$0xf]
    %v205 = vld [vmem:[#allocation5 + $0x278] sm:$0xf]
    %v206 = vld [vmem:[#allocation5 + $0x27c] sm:$0xf]
    %v207 = vld [vmem:[%s2] sm:$0x1]
    %v209 = vperm.slane %v207, 0
    %212 = vst [vmem:[#allocation1] ss:$9 sm:$0xff] %v45
    %v213 = vld [vmem:[#allocation1] sm:$0xff]
    %v214 = vld [vmem:[#allocation1 + $0x9] sm:$0xff]
    %v215 = vld [vmem:[#allocation1 + $0x12] sm:$0xff]
    %v216 = vld [vmem:[#allocation1 + $0x1b] sm:$0xff]
    %v217 = vld [vmem:[#allocation1 + $0x24] sm:$0xff]
    %v218 = vld [vmem:[#allocation1 + $0x2d] sm:$0xff]
    %v219 = vld [vmem:[#allocation1 + $0x36] sm:$0xff]
    %v220 = vld [vmem:[#allocation1 + $0x3f] sm:$0xff]
    %222 = vst [vmem:[#allocation1] ss:$9 sm:$0xff] %v46
    %v223 = vld [vmem:[#allocation1] sm:$0xff]
    %v224 = vld [vmem:[#allocation1 + $0x9] sm:$0xff]
    %v395 = vunpack.c.l.b16 %v47
    %v396 = vunpack.c.l.b16 %v48
    %v397 = vunpack.c.l.b16 %v49
    %v398 = vunpack.c.l.b16 %v50
    %v399 = vunpack.c.l.b16 %v51
    %v400 = vunpack.c.l.b16 %v52
    %v401 = vunpack.c.l.b16 %v53
    %v402 = vunpack.c.l.b16 %v54
    %v403 = vunpack.c.l.b16 %v55
    %v404 = vunpack.c.l.b16 %v56
    %v405 = vunpack.c.l.b16 %v57
    %v406 = vunpack.c.l.b16 %v58
    %v407 = vunpack.c.l.b16 %v59
    %v408 = vunpack.c.l.b16 %v60
    %v409 = vunpack.c.l.b16 %v61
    %v410 = vunpack.c.l.b16 %v62
    %v411 = vunpack.c.l.b16 %v63
    %v412 = vunpack.c.l.b16 %v64
    %v413 = vunpack.c.l.b16 %v65
    %v414 = vunpack.c.l.b16 %v66
    %v415 = vunpack.c.l.b16 %v67
    %v416 = vunpack.c.l.b16 %v68
    %v417 = vunpack.c.l.b16 %v69
    %v418 = vunpack.c.l.b16 %v70
    %v419 = vunpack.c.l.b16 %v71
    %v420 = vunpack.c.l.b16 %v72
    %v421 = vunpack.c.l.b16 %v73
    %v422 = vunpack.c.l.b16 %v74
    %v423 = vunpack.c.l.b16 %v75
    %v424 = vunpack.c.l.b16 %v76
    %v425 = vunpack.c.l.b16 %v77
    %v426 = vunpack.c.l.b16 %v78
    %v427 = vunpack.c.l.b16 %v79
    %v428 = vunpack.c.l.b16 %v80
    %v429 = vunpack.c.l.b16 %v81
    %v430 = vunpack.c.l.b16 %v82
    %v431 = vunpack.c.l.b16 %v83
    %v432 = vunpack.c.l.b16 %v84
    %v433 = vunpack.c.l.b16 %v85
    %v434 = vunpack.c.l.b16 %v86
    %v435 = vunpack.c.l.b16 %v87
    %v436 = vunpack.c.l.b16 %v88
    %v437 = vunpack.c.l.b16 %v89
    %v438 = vunpack.c.l.b16 %v90
    %v439 = vunpack.c.l.b16 %v91
    %v440 = vunpack.c.l.b16 %v92
    %v441 = vunpack.c.l.b16 %v93
    %v442 = vunpack.c.l.b16 %v94
    %v443 = vunpack.c.l.b16 %v95
    %v444 = vunpack.c.l.b16 %v96
    %v445 = vunpack.c.l.b16 %v97
    %v446 = vunpack.c.l.b16 %v98
    %v447 = vunpack.c.l.b16 %v99
    %v448 = vunpack.c.l.b16 %v100
    %v449 = vunpack.c.l.b16 %v101
    %v450 = vunpack.c.l.b16 %v102
    %v451 = vunpack.c.l.b16 %v103
    %v452 = vunpack.c.l.b16 %v104
    %v453 = vunpack.c.l.b16 %v105
    %v454 = vunpack.c.l.b16 %v106
    %v455 = vunpack.c.l.b16 %v107
    %v456 = vunpack.c.l.b16 %v108
    %v457 = vunpack.c.l.b16 %v109
    %v458 = vunpack.c.l.b16 %v110
    %v459 = vunpack.c.l.b16 %v111
    %v460 = vunpack.c.l.b16 %v112
    %v461 = vunpack.c.l.b16 %v113
    %v462 = vunpack.c.l.b16 %v114
    %v463 = vunpack.c.l.b16 %v115
    %v464 = vunpack.c.l.b16 %v116
    %v465 = vunpack.c.l.b16 %v117
    %v466 = vunpack.c.l.b16 %v118
    %v467 = vunpack.c.l.b16 %v119
    %v468 = vunpack.c.l.b16 %v120
    %v469 = vunpack.c.l.b16 %v121
    %v470 = vunpack.c.l.b16 %v122
    %v471 = vunpack.c.l.b16 %v123
    %v472 = vunpack.c.l.b16 %v124
    %v473 = vunpack.c.l.b16 %v125
    %v474 = vunpack.c.l.b16 %v126
    %v475 = vunpack.c.l.b16 %v127
    %v476 = vunpack.c.l.b16 %v128
    %v477 = vunpack.c.l.b16 %v129
    %v478 = vunpack.c.l.b16 %v130
    %v479 = vunpack.c.l.b16 %v131
    %v480 = vunpack.c.l.b16 %v132
    %v481 = vunpack.c.l.b16 %v133
    %v482 = vunpack.c.l.b16 %v134
    %v483 = vunpack.c.l.b16 %v135
    %v484 = vunpack.c.l.b16 %v136
    %v485 = vunpack.c.l.b16 %v137
    %v486 = vunpack.c.l.b16 %v138
    %v487 = vunpack.c.l.b16 %v139
    %v488 = vunpack.c.l.b16 %v140
    %v489 = vunpack.c.l.b16 %v141
    %v490 = vunpack.c.l.b16 %v142
    %v491 = vunpack.c.l.b16 %v143
    %v492 = vunpack.c.l.b16 %v144
    %v493 = vunpack.c.l.b16 %v145
    %v494 = vunpack.c.l.b16 %v146
    %v495 = vunpack.c.l.b16 %v147
    %v496 = vunpack.c.l.b16 %v148
    %v497 = vunpack.c.l.b16 %v149
    %v498 = vunpack.c.l.b16 %v150
    %v499 = vunpack.c.l.b16 %v151
    %v500 = vunpack.c.l.b16 %v152
    %v501 = vunpack.c.l.b16 %v153
    %v502 = vunpack.c.l.b16 %v154
    %v503 = vunpack.c.l.b16 %v155
    %v504 = vunpack.c.l.b16 %v156
    %v505 = vunpack.c.l.b16 %v157
    %v506 = vunpack.c.l.b16 %v158
    %v507 = vunpack.c.l.b16 %v159
    %v508 = vunpack.c.l.b16 %v160
    %v509 = vunpack.c.l.b16 %v161
    %v510 = vunpack.c.l.b16 %v162
    %v511 = vunpack.c.l.b16 %v163
    %v512 = vunpack.c.l.b16 %v164
    %v513 = vunpack.c.l.b16 %v165
    %v514 = vunpack.c.l.b16 %v166
    %v515 = vunpack.c.l.b16 %v167
    %v516 = vunpack.c.l.b16 %v168
    %v517 = vunpack.c.l.b16 %v169
    %v518 = vunpack.c.l.b16 %v170
    %v519 = vunpack.c.l.b16 %v171
    %v520 = vunpack.c.l.b16 %v172
    %v521 = vunpack.c.l.b16 %v173
    %v522 = vunpack.c.l.b16 %v174
    %v523 = vunpack.c.l.b16 %v175
    %v524 = vunpack.c.l.b16 %v176
    %v525 = vunpack.c.l.b16 %v177
    %v526 = vunpack.c.l.b16 %v178
    %v527 = vunpack.c.l.b16 %v179
    %v528 = vunpack.c.l.b16 %v180
    %v529 = vunpack.c.l.b16 %v181
    %v530 = vunpack.c.l.b16 %v182
    %v531 = vunpack.c.l.b16 %v183
    %v532 = vunpack.c.l.b16 %v184
    %v533 = vunpack.c.l.b16 %v185
    %v534 = vunpack.c.l.b16 %v186
    %v535 = vunpack.c.l.b16 %v187
    %v536 = vunpack.c.l.b16 %v188
    %v537 = vunpack.c.l.b16 %v189
    %v538 = vunpack.c.l.b16 %v190
    %v539 = vunpack.c.l.b16 %v191
    %v540 = vunpack.c.l.b16 %v192
    %v541 = vunpack.c.l.b16 %v193
    %v542 = vunpack.c.l.b16 %v194
    %v543 = vunpack.c.l.b16 %v195
    %v544 = vunpack.c.l.b16 %v196
    %v545 = vunpack.c.l.b16 %v197
    %v546 = vunpack.c.l.b16 %v198
    %v547 = vunpack.c.l.b16 %v199
    %v548 = vunpack.c.l.b16 %v200
    %v549 = vunpack.c.l.b16 %v201
    %v550 = vunpack.c.l.b16 %v202
    %v551 = vunpack.c.l.b16 %v203
    %v552 = vunpack.c.l.b16 %v204
    %v553 = vunpack.c.l.b16 %v205
    %v554 = vunpack.c.l.b16 %v206
    %v555 = vpack.c.b16 %v396, %v395
    %v556 = vpack.c.b16 %v398, %v397
    %v557 = vpack.c.b16 %v400, %v399
    %v558 = vpack.c.b16 %v402, %v401
    %v559 = vpack.c.b16 %v404, %v403
    %v560 = vpack.c.b16 %v406, %v405
    %v561 = vpack.c.b16 %v408, %v407
    %v562 = vpack.c.b16 %v410, %v409
    %v563 = vpack.c.b16 %v412, %v411
    %v564 = vpack.c.b16 %v414, %v413
    %v565 = vpack.c.b16 %v416, %v415
    %v566 = vpack.c.b16 %v418, %v417
    %v567 = vpack.c.b16 %v420, %v419
    %v568 = vpack.c.b16 %v422, %v421
    %v569 = vpack.c.b16 %v424, %v423
    %v570 = vpack.c.b16 %v426, %v425
    %v571 = vpack.c.b16 %v428, %v427
    %v572 = vpack.c.b16 %v430, %v429
    %v573 = vpack.c.b16 %v432, %v431
    %v574 = vpack.c.b16 %v434, %v433
    %v575 = vpack.c.b16 %v436, %v435
    %v576 = vpack.c.b16 %v438, %v437
    %v577 = vpack.c.b16 %v440, %v439
    %v578 = vpack.c.b16 %v442, %v441
    %v579 = vpack.c.b16 %v444, %v443
    %v580 = vpack.c.b16 %v446, %v445
    %v581 = vpack.c.b16 %v448, %v447
    %v582 = vpack.c.b16 %v450, %v449
    %v583 = vpack.c.b16 %v452, %v451
    %v584 = vpack.c.b16 %v454, %v453
    %v585 = vpack.c.b16 %v456, %v455
    %v586 = vpack.c.b16 %v458, %v457
    %v587 = vpack.c.b16 %v460, %v459
    %v588 = vpack.c.b16 %v462, %v461
    %v589 = vpack.c.b16 %v464, %v463
    %v590 = vpack.c.b16 %v466, %v465
    %v591 = vpack.c.b16 %v468, %v467
    %v592 = vpack.c.b16 %v470, %v469
    %v593 = vpack.c.b16 %v472, %v471
    %v594 = vpack.c.b16 %v474, %v473
    %v595 = vpack.c.b16 %v476, %v475
    %v596 = vpack.c.b16 %v478, %v477
    %v597 = vpack.c.b16 %v480, %v479
    %v598 = vpack.c.b16 %v482, %v481
    %v599 = vpack.c.b16 %v484, %v483
    %v600 = vpack.c.b16 %v486, %v485
    %v601 = vpack.c.b16 %v488, %v487
    %v602 = vpack.c.b16 %v490, %v489
    %v603 = vpack.c.b16 %v492, %v491
    %v604 = vpack.c.b16 %v494, %v493
    %v605 = vpack.c.b16 %v496, %v495
    %v606 = vpack.c.b16 %v498, %v497
    %v607 = vpack.c.b16 %v500, %v499
    %v608 = vpack.c.b16 %v502, %v501
    %v609 = vpack.c.b16 %v504, %v503
    %v610 = vpack.c.b16 %v506, %v505
    %v611 = vpack.c.b16 %v508, %v507
    %v612 = vpack.c.b16 %v510, %v509
    %v613 = vpack.c.b16 %v512, %v511
    %v614 = vpack.c.b16 %v514, %v513
    %v615 = vpack.c.b16 %v516, %v515
    %v616 = vpack.c.b16 %v518, %v517
    %v617 = vpack.c.b16 %v520, %v519
    %v618 = vpack.c.b16 %v522, %v521
    %v619 = vpack.c.b16 %v524, %v523
    %v620 = vpack.c.b16 %v526, %v525
    %v621 = vpack.c.b16 %v528, %v527
    %v622 = vpack.c.b16 %v530, %v529
    %v623 = vpack.c.b16 %v532, %v531
    %v624 = vpack.c.b16 %v534, %v533
    %v625 = vpack.c.b16 %v536, %v535
    %v626 = vpack.c.b16 %v538, %v537
    %v627 = vpack.c.b16 %v540, %v539
    %v628 = vpack.c.b16 %v542, %v541
    %v629 = vpack.c.b16 %v544, %v543
    %v630 = vpack.c.b16 %v546, %v545
    %v631 = vpack.c.b16 %v548, %v547
    %v632 = vpack.c.b16 %v550, %v549
    %v633 = vpack.c.b16 %v552, %v551
    %v634 = vpack.c.b16 %v554, %v553
    %715 = vmatpush.bf16.msra.mxu0 %v562
    %716 = vmatpush.bf16.msra.mxu0 %v561
    %717 = vmatpush.bf16.msra.mxu0 %v560
    %718 = vmatpush.bf16.msra.mxu0 %v559
    %719 = vmatpush.bf16.msra.mxu0 %v558
    %720 = vmatpush.bf16.msra.mxu0 %v557
    %721 = vmatpush.bf16.msra.mxu0 %v556
    %722 = vmatpush.bf16.msra.mxu0 %v555
    %723 = vmatmul.bf16.gmra.mxu0 %v213
    %v724 = vpop.f32.mrf.mxu0
    %v725 = vadd.f32 %v209, %v724
    %v726 = vpop.f32.mrf.mxu0
    %727 = vdwg.mxu0
    %728 = vmatpush.bf16.msra.mxu0 %v570
    %729 = vmatpush.bf16.msra.mxu0 %v569
    %730 = vmatpush.bf16.msra.mxu0 %v568
    %731 = vmatpush.bf16.msra.mxu0 %v567
    %732 = vmatpush.bf16.msra.mxu0 %v566
    %733 = vmatpush.bf16.msra.mxu0 %v565
    %734 = vmatpush.bf16.msra.mxu0 %v564
    %735 = vmatpush.bf16.msra.mxu0 %v563
    %736 = vmatmul.bf16.gmra.mxu0 %v214
    %v737 = vpop.f32.mrf.mxu0
    %v738 = vadd.f32 %v725, %v737
    %v739 = vpop.f32.mrf.mxu0
    %740 = vdwg.mxu0
    %741 = vmatpush.bf16.msra.mxu0 %v578
    %742 = vmatpush.bf16.msra.mxu0 %v577
    %743 = vmatpush.bf16.msra.mxu0 %v576
    %744 = vmatpush.bf16.msra.mxu0 %v575
    %745 = vmatpush.bf16.msra.mxu0 %v574
    %746 = vmatpush.bf16.msra.mxu0 %v573
    %747 = vmatpush.bf16.msra.mxu0 %v572
    %748 = vmatpush.bf16.msra.mxu0 %v571
    %749 = vmatmul.bf16.gmra.mxu0 %v215
    %v750 = vpop.f32.mrf.mxu0
    %v751 = vadd.f32 %v738, %v750
    %v752 = vpop.f32.mrf.mxu0
    %753 = vdwg.mxu0
    %754 = vmatpush.bf16.msra.mxu0 %v586
    %755 = vmatpush.bf16.msra.mxu0 %v585
    %756 = vmatpush.bf16.msra.mxu0 %v584
    %757 = vmatpush.bf16.msra.mxu0 %v583
    %758 = vmatpush.bf16.msra.mxu0 %v582
    %759 = vmatpush.bf16.msra.mxu0 %v581
    %760 = vmatpush.bf16.msra.mxu0 %v580
    %761 = vmatpush.bf16.msra.mxu0 %v579
    %762 = vmatmul.bf16.gmra.mxu0 %v216
    %v763 = vpop.f32.mrf.mxu0
    %v764 = vadd.f32 %v751, %v763
    %v765 = vpop.f32.mrf.mxu0
    %766 = vdwg.mxu0
    %767 = vmatpush.bf16.msra.mxu0 %v594
    %768 = vmatpush.bf16.msra.mxu0 %v593
    %769 = vmatpush.bf16.msra.mxu0 %v592
    %770 = vmatpush.bf16.msra.mxu0 %v591
    %771 = vmatpush.bf16.msra.mxu0 %v590
    %772 = vmatpush.bf16.msra.mxu0 %v589
    %773 = vmatpush.bf16.msra.mxu0 %v588
    %774 = vmatpush.bf16.msra.mxu0 %v587
    %775 = vmatmul.bf16.gmra.mxu0 %v217
    %v776 = vpop.f32.mrf.mxu0
    %v777 = vadd.f32 %v764, %v776
    %v778 = vpop.f32.mrf.mxu0
    %779 = vdwg.mxu0
    %780 = vmatpush.bf16.msra.mxu0 %v602
    %781 = vmatpush.bf16.msra.mxu0 %v601
    %782 = vmatpush.bf16.msra.mxu0 %v600
    %783 = vmatpush.bf16.msra.mxu0 %v599
    %784 = vmatpush.bf16.msra.mxu0 %v598
    %785 = vmatpush.bf16.msra.mxu0 %v597
    %786 = vmatpush.bf16.msra.mxu0 %v596
    %787 = vmatpush.bf16.msra.mxu0 %v595
    %788 = vmatmul.bf16.gmra.mxu0 %v218
    %v789 = vpop.f32.mrf.mxu0
    %v790 = vadd.f32 %v777, %v789
    %v791 = vpop.f32.mrf.mxu0
    %792 = vdwg.mxu0
    %793 = vmatpush.bf16.msra.mxu0 %v610
    %794 = vmatpush.bf16.msra.mxu0 %v609
    %795 = vmatpush.bf16.msra.mxu0 %v608
    %796 = vmatpush.bf16.msra.mxu0 %v607
    %797 = vmatpush.bf16.msra.mxu0 %v606
    %798 = vmatpush.bf16.msra.mxu0 %v605
    %799 = vmatpush.bf16.msra.mxu0 %v604
    %800 = vmatpush.bf16.msra.mxu0 %v603
    %801 = vmatmul.bf16.gmra.mxu0 %v219
    %v802 = vpop.f32.mrf.mxu0
    %v803 = vadd.f32 %v790, %v802
    %v804 = vpop.f32.mrf.mxu0
    %805 = vdwg.mxu0
    %806 = vmatpush.bf16.msra.mxu0 %v618
    %807 = vmatpush.bf16.msra.mxu0 %v617
    %808 = vmatpush.bf16.msra.mxu0 %v616
    %809 = vmatpush.bf16.msra.mxu0 %v615
    %810 = vmatpush.bf16.msra.mxu0 %v614
    %811 = vmatpush.bf16.msra.mxu0 %v613
    %812 = vmatpush.bf16.msra.mxu0 %v612
    %813 = vmatpush.bf16.msra.mxu0 %v611
    %814 = vmatmul.bf16.gmra.mxu0 %v220
    %v815 = vpop.f32.mrf.mxu0
    %v816 = vadd.f32 %v803, %v815
    %v817 = vpop.f32.mrf.mxu0
    %818 = vdwg.mxu0
    %819 = vmatpush.bf16.msra.mxu0 %v626
    %820 = vmatpush.bf16.msra.mxu0 %v625
    %821 = vmatpush.bf16.msra.mxu0 %v624
    %822 = vmatpush.bf16.msra.mxu0 %v623
    %823 = vmatpush.bf16.msra.mxu0 %v622
    %824 = vmatpush.bf16.msra.mxu0 %v621
    %825 = vmatpush.bf16.msra.mxu0 %v620
    %826 = vmatpush.bf16.msra.mxu0 %v619
    %827 = vmatmul.bf16.gmra.mxu0 %v223
    %v828 = vpop.f32.mrf.mxu0
    %v829 = vadd.f32 %v816, %v828
    %v830 = vpop.f32.mrf.mxu0
    %831 = vdwg.mxu0
    %832 = vmatpush.bf16.msra.mxu0 %v634
    %833 = vmatpush.bf16.msra.mxu0 %v633
    %834 = vmatpush.bf16.msra.mxu0 %v632
    %835 = vmatpush.bf16.msra.mxu0 %v631
    %836 = vmatpush.bf16.msra.mxu0 %v630
    %837 = vmatpush.bf16.msra.mxu0 %v629
    %838 = vmatpush.bf16.msra.mxu0 %v628
    %839 = vmatpush.bf16.msra.mxu0 %v627
    %840 = vmatmul.bf16.gmra.mxu0 %v224
    %v841 = vpop.f32.mrf.mxu0
    %v842 = vadd.f32 %v829, %v841
    %v843 = vpop.f32.mrf.mxu0
    %844 = vdwg.mxu0
    %845 = vst [vmem:[#allocation7] sm:$0x3] %v842
    // Predicated region
    $region22: #{tpu_custom_call.1} parent=1 // pred_check
      _
    $region23: #{tpu_custom_call.1} parent=1 // pred_check_branch
      %847 = sbr.rel (0) target = $region25
    $region24: #{tpu_custom_call.1} parent=1 // pred_region
      %849 = vsyncadd [#allocation4], 0
      %s851 = sshll.u32 [#allocation7], 4
      %s852 = int_to_ptr.vmem [resolvable:$true] %s851
      %s853 = sshll.u32 %s3, 4
      %s854 = int_to_ptr.hbm [resolvable:$true] %s853
      %856 = dma.vmem_to_hbm [thread:$0]  %s852, 32, %s854, [#allocation4]
    $region25: #{tpu_custom_call.1} parent=1 // pred_fallthru
      _
    // Predicated region
    $region26: #{tpu_custom_call.1} parent=1 // pred_check
      _
    $region27: #{tpu_custom_call.1} parent=1 // pred_check_branch
      %858 = sbr.rel (0) target = $region29
    $region28: #{tpu_custom_call.1} parent=1 // pred_region
      %860 = dma.done [#allocation4], 32
    $region29: #{tpu_custom_call.1} parent=1 // pred_fallthru
      _
    %861 = vsyncpa [#allocation3], 1
    %862 = vsyncpa [#allocation6], 1
    %863 = vsyncpa [#allocation4], 1

</llo_original>
